<compile_context>
chip_gen: v5e
topology: v5e:2x2
jax: 0.10.0
libtpu: 0.0.40
codegen_flags: <defaults>
</compile_context>

<pallas_src>
import jax
import jax.numpy as jnp
from jax import lax
from jax.experimental import pallas as pl
from jax.experimental.pallas import tpu as pltpu


# Set to jnp.bfloat16 on v6e/v7x for the fast MXU path (f32 accumulation is
# kept via preferred_element_type); f32 default keeps bit-tight reference math.
_MXU_DTYPE = jnp.float32


def _round_up(x, m):
    return ((x + m - 1) // m) * m


def _tile_batch(batch, block_batch):
    """Pick a sublane-aligned batch tile; prefer >= 2 grid steps (v7x 2 TCs)."""
    padded = _round_up(batch, 8)
    if padded <= block_batch:
        if padded >= 16:
            tb = _round_up(pl.cdiv(padded, 2), 8)   # split into ~2 tiles
        else:
            tb = padded
    else:
        tb = block_batch
    padded = _round_up(batch, tb)
    return tb, padded


# ---------------------------------------------------------------------------
# Kernels
# ---------------------------------------------------------------------------
def mlp_kernel(x_ref, w1_ref, b1_ref, w2_ref, b2_ref, o_ref):
    """Generic dense forward: x @ W1 + b1 -> ReLU -> @ W2p + b2p, store n_act."""
    h = jnp.dot(x_ref[...].astype(_MXU_DTYPE), w1_ref[...].astype(_MXU_DTYPE),
                preferred_element_type=jnp.float32)
    h = jnp.maximum(h + b1_ref[...], 0.0)
    out = jnp.dot(h.astype(_MXU_DTYPE), w2_ref[...].astype(_MXU_DTYPE),
                  preferred_element_type=jnp.float32)
    out = out + b2_ref[...]
    # W2/b2 are lane-padded for the MXU; store only the real action lanes.
    o_ref[...] = out[:, : o_ref.shape[1]].astype(o_ref.dtype)


def onehot_mlp_kernel(states_ref, w1_ref, b1_ref, w2_ref, b2_ref, o_ref):
    """One-hot fast path: build the one-hot block on the VPU and feed the MXU
    directly (no serialized row-gather loop)."""
    tb = o_ref.shape[0]
    obs = w1_ref.shape[0]
    s = states_ref[...]                                       # (tb, 1) int32
    iota = lax.broadcasted_iota(jnp.int32, (tb, obs), 1)
    onehot = (s == iota).astype(_MXU_DTYPE)                   # (tb, obs)
    h = jnp.dot(onehot, w1_ref[...].astype(_MXU_DTYPE),
                preferred_element_type=jnp.float32)
    h = jnp.maximum(h + b1_ref[...], 0.0)
    out = jnp.dot(h.astype(_MXU_DTYPE), w2_ref[...].astype(_MXU_DTYPE),
                  preferred_element_type=jnp.float32)
    out = out + b2_ref[...]
    o_ref[...] = out[:, : o_ref.shape[1]].astype(o_ref.dtype)


# ---------------------------------------------------------------------------
# Wrappers
# ---------------------------------------------------------------------------
def prepare_params(w1, b1, w2, b2):
    """One-time setup (outside the RL hot loop): pad the output projection to
    128 MXU lanes.  Returns the params tuple consumed by net_forward*."""
    n_act = w2.shape[1]
    n_pad = _round_up(n_act, 128)
    w2p = jnp.pad(w2, ((0, 0), (0, n_pad - n_act)))
    b2p = jnp.pad(b2, ((0, 0), (0, n_pad - n_act)))
    return w1, b1, w2p, b2p, n_act


def net_forward(x, params, *, block_batch=1024):
    """Pallas forward of Net for arbitrary dense x: [B, obs] -> [B, n_act]."""
    w1, b1, w2p, b2p, n_act = params
    batch, obs = x.shape
    hidden = w1.shape[1]
    n_pad = w2p.shape[1]

    tb, padded_b = _tile_batch(batch, block_batch)
    if padded_b != batch:
        x = jnp.pad(x, ((0, padded_b - batch), (0, 0)))
    grid = (padded_b // tb,)

    out = pl.pallas_call(
        mlp_kernel,
        out_shape=jax.ShapeDtypeStruct((padded_b, n_act), x.dtype),
        grid=grid,
        in_specs=[
            pl.BlockSpec((tb, obs), lambda i: (i, 0)),        # activations
            pl.BlockSpec((obs, hidden), lambda i: (0, 0)),    # W1 (resident)
            pl.BlockSpec((1, hidden), lambda i: (0, 0)),      # b1 (resident)
            pl.BlockSpec((hidden, n_pad), lambda i: (0, 0)),  # W2p (resident)
            pl.BlockSpec((1, n_pad), lambda i: (0, 0)),       # b2p (resident)
        ],
        out_specs=pl.BlockSpec((tb, n_act), lambda i: (i, 0)),
        compiler_params=pltpu.CompilerParams(
            dimension_semantics=("parallel",)),
    )(x, w1, b1, w2p, b2p)
    return out[:batch]


def net_forward_onehot(states, params, *, block_batch=1024):
    """Forward pass when x = one_hot(states).  states: [B] int32 -> [B, n_act]."""
    w1, b1, w2p, b2p, n_act = params
    (batch,) = states.shape
    obs, hidden = w1.shape
    n_pad = w2p.shape[1]

    tb, padded_b = _tile_batch(batch, block_batch)
    s2d = jnp.pad(states.astype(jnp.int32), (0, padded_b - batch))
    s2d = s2d.reshape(padded_b, 1)
    grid = (padded_b // tb,)

    out = pl.pallas_call(
        onehot_mlp_kernel,
        out_shape=jax.ShapeDtypeStruct((padded_b, n_act), w1.dtype),
        grid=grid,
        in_specs=[
            pl.BlockSpec((tb, 1), lambda i: (i, 0)),          # states (int32)
            pl.BlockSpec((obs, hidden), lambda i: (0, 0)),    # W1 (resident)
            pl.BlockSpec((1, hidden), lambda i: (0, 0)),      # b1 (resident)
            pl.BlockSpec((hidden, n_pad), lambda i: (0, 0)),  # W2p (resident)
            pl.BlockSpec((1, n_pad), lambda i: (0, 0)),       # b2p (resident)
        ],
        out_specs=pl.BlockSpec((tb, n_act), lambda i: (i, 0)),
        compiler_params=pltpu.CompilerParams(
            dimension_semantics=("parallel",)),
    )(s2d, w1, b1, w2p, b2p)
    return out[:batch]


# ---------------------------------------------------------------------------
# Params / reference
# ---------------------------------------------------------------------------
def init_params(key, obs_size, hidden_size, n_actions, dtype=jnp.float32):
    """Deterministic init mimicking PyTorch nn.Linear default
    (uniform in +/- 1/sqrt(fan_in)); weights stored as [in, out]."""
    k1, k2, k3, k4 = jax.random.split(key, 4)
    lim1 = 1.0 / jnp.sqrt(jnp.float32(obs_size))
    lim2 = 1.0 / jnp.sqrt(jnp.float32(hidden_size))
    w1 = jax.random.uniform(k1, (obs_size, hidden_size), dtype, -lim1, lim1)
    b1 = jax.random.uniform(k2, (1, hidden_size), dtype, -lim1, lim1)
    w2 = jax.random.uniform(k3, (hidden_size, n_actions), dtype, -lim2, lim2)
    b2 = jax.random.uniform(k4, (1, n_actions), dtype, -lim2, lim2)
    return w1, b1, w2, b2


def reference_forward(x, w1, b1, w2, b2):
    h = jnp.maximum(x @ w1 + b1, 0.0)
    return h @ w2 + b2


if __name__ == "__main__":
    # FrozenLake-4x4: obs_size=16 (one-hot state), hidden=128, n_actions=4.
    OBS_SIZE, HIDDEN_SIZE, N_ACTIONS = 16, 128, 4
    BATCH = 24   # exercises batch padding and a 2-step ("parallel") grid

    key = jax.random.PRNGKey(0)
    kx, kp = jax.random.split(key)
    states = jax.random.randint(kx, (BATCH,), 0, OBS_SIZE, dtype=jnp.int32)
    x = jax.nn.one_hot(states, OBS_SIZE, dtype=jnp.float32)

    w1, b1, w2, b2 = init_params(kp, OBS_SIZE, HIDDEN_SIZE, N_ACTIONS)
    params = prepare_params(w1, b1, w2, b2)          # pads W2/b2 once
    ref = reference_forward(x, w1, b1, w2, b2)

    # Generic dense path (module semantics for arbitrary x).
    out_dense = jax.block_until_ready(net_forward(x, params))
    assert out_dense.shape == (BATCH, N_ACTIONS)
    assert jnp.allclose(out_dense, ref, atol=1e-5, rtol=1e-5)

    # One-hot fast path (vectorized one-hot built in-kernel).
    out_onehot = jax.block_until_ready(net_forward_onehot(states, params))
    assert out_onehot.shape == (BATCH, N_ACTIONS)
    assert jnp.allclose(out_onehot, ref, atol=1e-5, rtol=1e-5)

    # TODO(synk): downstream log_softmax/argmax fusion lives outside Net.forward,
    # so it is not fused here to keep the module's semantics.
    print("KERNEL_OK")
</pallas_src>

<mosaic_0001>
module attributes {stable_mosaic.version = 11 : i64} {
  func.func @mlp_kernel(%arg0: i32, %arg1: memref<16x16xf32, #tpu.memory_space<vmem>>, %arg2: memref<16x128xf32, #tpu.memory_space<vmem>>, %arg3: memref<1x128xf32, #tpu.memory_space<vmem>>, %arg4: memref<128x128xf32, #tpu.memory_space<vmem>>, %arg5: memref<1x128xf32, #tpu.memory_space<vmem>>, %arg6: memref<16x4xf32, #tpu.memory_space<vmem>>) attributes {dimension_semantics = [#tpu.dimension_semantics<parallel>], iteration_bounds = array<i64: 2>, scalar_prefetch = 0 : i64, scratch_operands = 0 : i64, tpu.core_type = #tpu.core_type<tc>, window_params = [{transform_indices = @transform_0, window_bounds = array<i64: 16, 16>}, {pipeline_mode = #tpu.pipeline_mode<synchronous>, transform_indices = @transform_1, window_bounds = array<i64: 16, 128>}, {pipeline_mode = #tpu.pipeline_mode<synchronous>, transform_indices = @transform_2, window_bounds = array<i64: 1, 128>}, {pipeline_mode = #tpu.pipeline_mode<synchronous>, transform_indices = @transform_3, window_bounds = array<i64: 128, 128>}, {pipeline_mode = #tpu.pipeline_mode<synchronous>, transform_indices = @transform_4, window_bounds = array<i64: 1, 128>}, {transform_indices = @transform_5, window_bounds = array<i64: 16, 4>}]} {
    %c0 = arith.constant 0 : index
    %c0_0 = arith.constant 0 : index
    %0 = vector.load %arg1[%c0, %c0_0] : memref<16x16xf32, #tpu.memory_space<vmem>>, vector<16x16xf32>
    %c0_1 = arith.constant 0 : index
    %c0_2 = arith.constant 0 : index
    %1 = vector.load %arg2[%c0_1, %c0_2] : memref<16x128xf32, #tpu.memory_space<vmem>>, vector<16x128xf32>
    %cst = arith.constant dense<0.000000e+00> : vector<16x128xf32>
    %2 = tpu.matmul %0, %1, %cst {dimension_numbers = #tpu.dot_dimension_numbers<[1], [0], [0], [1], [0, 0, 1, 1], [], []>} : vector<16x16xf32>, vector<16x128xf32>, vector<16x128xf32> -> vector<16x128xf32>
    %c0_3 = arith.constant 0 : index
    %c0_4 = arith.constant 0 : index
    %3 = vector.load %arg3[%c0_3, %c0_4] : memref<1x128xf32, #tpu.memory_space<vmem>>, vector<1x128xf32>
    %4 = vector.broadcast %3 : vector<1x128xf32> to vector<16x128xf32>
    %5 = arith.addf %2, %4 : vector<16x128xf32>
    %cst_5 = arith.constant 0.000000e+00 : f32
    %6 = vector.broadcast %cst_5 : f32 to vector<16x128xf32>
    %7 = arith.maximumf %5, %6 : vector<16x128xf32>
    %c0_6 = arith.constant 0 : index
    %c0_7 = arith.constant 0 : index
    %8 = vector.load %arg4[%c0_6, %c0_7] : memref<128x128xf32, #tpu.memory_space<vmem>>, vector<128x128xf32>
    %cst_8 = arith.constant dense<0.000000e+00> : vector<16x128xf32>
    %9 = tpu.matmul %7, %8, %cst_8 {dimension_numbers = #tpu.dot_dimension_numbers<[1], [0], [0], [1], [0, 0, 1, 1], [], []>} : vector<16x128xf32>, vector<128x128xf32>, vector<16x128xf32> -> vector<16x128xf32>
    %c0_9 = arith.constant 0 : index
    %c0_10 = arith.constant 0 : index
    %10 = vector.load %arg5[%c0_9, %c0_10] : memref<1x128xf32, #tpu.memory_space<vmem>>, vector<1x128xf32>
    %11 = vector.broadcast %10 : vector<1x128xf32> to vector<16x128xf32>
    %12 = arith.addf %9, %11 : vector<16x128xf32>
    %13 = vector.extract_strided_slice %12 {offsets = [0, 0], sizes = [16, 4], strides = [1, 1]} : vector<16x128xf32> to vector<16x4xf32>
    %c0_11 = arith.constant 0 : index
    %c0_12 = arith.constant 0 : index
    %14 = vector.load %arg6[%c0_11, %c0_12] : memref<16x4xf32, #tpu.memory_space<vmem>>, vector<16x4xf32>
    tpu.vector_store %arg6[%c0_11, %c0_12], %13 {strides = array<i32>} : memref<16x4xf32, #tpu.memory_space<vmem>>, vector<16x4xf32>,
    return
  }
  func.func @transform_0(%arg0: i32) -> (i32, i32) {
    %c0_i32 = arith.constant 0 : i32
    %c0_i32_0 = arith.constant 0 : i32
    return %arg0, %c0_i32 : i32, i32
  }
  func.func @transform_1(%arg0: i32) -> (i32, i32) {
    %c0_i32 = arith.constant 0 : i32
    %c0_i32_0 = arith.constant 0 : i32
    %c0_i32_1 = arith.constant 0 : i32
    return %c0_i32, %c0_i32_0 : i32, i32
  }
  func.func @transform_2(%arg0: i32) -> (i32, i32) {
    %c0_i32 = arith.constant 0 : i32
    %c0_i32_0 = arith.constant 0 : i32
    %c0_i32_1 = arith.constant 0 : i32
    return %c0_i32, %c0_i32_0 : i32, i32
  }
  func.func @transform_3(%arg0: i32) -> (i32, i32) {
    %c0_i32 = arith.constant 0 : i32
    %c0_i32_0 = arith.constant 0 : i32
    %c0_i32_1 = arith.constant 0 : i32
    return %c0_i32, %c0_i32_0 : i32, i32
  }
  func.func @transform_4(%arg0: i32) -> (i32, i32) {
    %c0_i32 = arith.constant 0 : i32
    %c0_i32_0 = arith.constant 0 : i32
    %c0_i32_1 = arith.constant 0 : i32
    return %c0_i32, %c0_i32_0 : i32, i32
  }
  func.func @transform_5(%arg0: i32) -> (i32, i32) {
    %c0_i32 = arith.constant 0 : i32
    %c0_i32_0 = arith.constant 0 : i32
    return %arg0, %c0_i32 : i32, i32
  }
}

</mosaic_0001>

<llo_original>
// kernel: tpu_custom_call.1
$region0: #{tpu_custom_call.1}
  #allocation0 [shape = 'u32[]', space=smem, size = 0x4, offset = 0x4, fixed_abs, tag = 'smem constant byte address 0x4 - core index']
  #allocation1 [shape = 'u32[72,128]{1,0:T(1,128)}', space=vmem, size = 0x9000, scoped, tag = 'internal scratch']
  %s0 = inlined_call_operand.vmem [shape: f32[32,16], index: 0, kind: input, shape index: {}]
  %s1 = inlined_call_operand.vmem [shape: f32[16,128], index: 1, kind: input, shape index: {}]
  %s2 = inlined_call_operand.vmem [shape: f32[1,128], index: 2, kind: input, shape index: {}]
  %s3 = inlined_call_operand.hbm [shape: f32[128,128], index: 3, kind: input, shape index: {}]
  %s4 = inlined_call_operand.vmem [shape: f32[1,128], index: 4, kind: input, shape index: {}]
  %s5 = inlined_call_operand.vmem [shape: f32[32,4], index: 5, kind: output, shape index: {}]
  %s6 = sld [smem:[#allocation0]]
  $region57: #{tpu_custom_call.1} parent=0
    _
  %s8 = ssub.s32 1, %s6
  %s9 = scalar_select 0, %s8, %s6
  $region1: #{tpu_custom_call.1} parent=0
    #allocation2 [shape = 'u8[65536]{0}', space=vmem, size = 0x10000, scoped, tag = 'input window, operand 3, single buffered']
    #allocation3 [shape = 's32[2]{0}', space=sflag, size = 0x8, scoped, tag = 'scoped memory for tpu_custom_call.1']
    %10 = vsyncpa [#allocation3], 0
    loop: start=0, step=1, limit=4
    $region2: #{tpu_custom_call.1} parent=1 // loop_pre_header
      _
    $region3: #{tpu_custom_call.1} parent=1 // loop_header
      %s12 = sphi 0, %s16
      %p13 = scmp.ge.s32.totalorder %s12, 4
      %s22 = sphi 0, %s24
      %s25 = sphi 0, %s22
      %s26 = sphi 0, %s25
      %s42 = sphi 0, %s26
      %s46 = sphi 0, %s46
      %s48 = sphi 0, %s46
      %s49 = sphi 0, %s48
      %s63 = sphi 0, %s49
      %s67 = sphi 0, %s67
      %s69 = sphi 0, %s67
      %s70 = sphi 0, %s69
      %s84 = sphi 0, %s70
      %s88 = sphi 0, %s88
      %s90 = sphi 0, %s88
      %s91 = sphi 0, %s90
      %s105 = sphi 0, %s91
      %s109 = sphi 0, %s109
      %s111 = sphi 0, %s109
      %s112 = sphi 0, %s111
      %s126 = sphi 0, %s112
      %s132 = sphi 0, %s134
      %s135 = sphi 0, %s132
      %s136 = sphi 0, %s135
      %s152 = sphi 0, %s136
    $region4: #{tpu_custom_call.1} parent=1 // loop_header_branch
      %15 = sbr.rel (%p13) target = $region8
    $region5: #{tpu_custom_call.1} parent=1 // loop_body
      %s17 = ssub.s32 %s12, 1
      %s18 = ssub.s32 %s12, 2
      %s19 = sadd.s32 %s12, 1
      %s20 = ssub.s32 %s12, %s19
      %p21 = scmp.eq.s32.totalorder %s20, 0
      %s23 = sadd.s32 %s22, 1
      %s24 = scalar_select %p21, %s22, %s23
      %p27 = pneg %p21
      %p28 = scmp.eq.s32.totalorder %s12, 1
      %p29 = por %p27, %p28
      %p30 = scmp.ne.s32.totalorder %s22, %s25
      %p31 = scmp.eq.s32.totalorder %s12, 0
      %p32 = por %p30, %p31
      %p33 = scmp.ne.s32.totalorder %s22, %s25
      %p34 = scmp.eq.s32.totalorder %s17, 1
      %p35 = por %p33, %p34
      %p36 = scmp.ne.s32.totalorder %s25, %s26
      %p37 = scmp.eq.s32.totalorder %s17, 0
      %p38 = por %p36, %p37
      %p39 = scmp.ne.s32.totalorder %s25, %s26
      %p40 = scmp.eq.s32.totalorder %s18, 1
      %p41 = por %p39, %p40
      %p43 = scmp.ne.s32.totalorder %s26, %s42
      %p44 = scmp.eq.s32.totalorder %s18, 0
      %p45 = por %p43, %p44
      %s47 = sadd.s32 %s46, 1
      %p50 = scmp.eq.s32.totalorder %s12, 1
      %p51 = scmp.ne.s32.totalorder %s46, %s48
      %p52 = scmp.eq.s32.totalorder %s12, 0
      %p53 = por %p51, %p52
      %p54 = scmp.ne.s32.totalorder %s46, %s48
      %p55 = scmp.eq.s32.totalorder %s17, 1
      %p56 = por %p54, %p55
      %p57 = scmp.ne.s32.totalorder %s48, %s49
      %p58 = scmp.eq.s32.totalorder %s17, 0
      %p59 = por %p57, %p58
      %p60 = scmp.ne.s32.totalorder %s48, %s49
      %p61 = scmp.eq.s32.totalorder %s18, 1
      %p62 = por %p60, %p61
      %p64 = scmp.ne.s32.totalorder %s49, %s63
      %p65 = scmp.eq.s32.totalorder %s18, 0
      %p66 = por %p64, %p65
      %s68 = sadd.s32 %s67, 1
      %p71 = scmp.eq.s32.totalorder %s12, 1
      %p72 = scmp.ne.s32.totalorder %s67, %s69
      %p73 = scmp.eq.s32.totalorder %s12, 0
      %p74 = por %p72, %p73
      %p75 = scmp.ne.s32.totalorder %s67, %s69
      %p76 = scmp.eq.s32.totalorder %s17, 1
      %p77 = por %p75, %p76
      %p78 = scmp.ne.s32.totalorder %s69, %s70
      %p79 = scmp.eq.s32.totalorder %s17, 0
      %p80 = por %p78, %p79
      %p81 = scmp.ne.s32.totalorder %s69, %s70
      %p82 = scmp.eq.s32.totalorder %s18, 1
      %p83 = por %p81, %p82
      %p85 = scmp.ne.s32.totalorder %s70, %s84
      %p86 = scmp.eq.s32.totalorder %s18, 0
      %p87 = por %p85, %p86
      %s89 = sadd.s32 %s88, 1
      %p92 = scmp.eq.s32.totalorder %s12, 1
      %p93 = scmp.ne.s32.totalorder %s88, %s90
      %p94 = scmp.eq.s32.totalorder %s12, 0
      %p95 = por %p93, %p94
      %p96 = scmp.ne.s32.totalorder %s88, %s90
      %p97 = scmp.eq.s32.totalorder %s17, 1
      %p98 = por %p96, %p97
      %p99 = scmp.ne.s32.totalorder %s90, %s91
      %p100 = scmp.eq.s32.totalorder %s17, 0
      %p101 = por %p99, %p100
      %p102 = scmp.ne.s32.totalorder %s90, %s91
      %p103 = scmp.eq.s32.totalorder %s18, 1
      %p104 = por %p102, %p103
      %p106 = scmp.ne.s32.totalorder %s91, %s105
      %p107 = scmp.eq.s32.totalorder %s18, 0
      %p108 = por %p106, %p107
      %s110 = sadd.s32 %s109, 1
      %p113 = scmp.eq.s32.totalorder %s12, 1
      %p114 = scmp.ne.s32.totalorder %s109, %s111
      %p115 = scmp.eq.s32.totalorder %s12, 0
      %p116 = por %p114, %p115
      %p117 = scmp.ne.s32.totalorder %s109, %s111
      %p118 = scmp.eq.s32.totalorder %s17, 1
      %p119 = por %p117, %p118
      %p120 = scmp.ne.s32.totalorder %s111, %s112
      %p121 = scmp.eq.s32.totalorder %s17, 0
      %p122 = por %p120, %p121
      %p123 = scmp.ne.s32.totalorder %s111, %s112
      %p124 = scmp.eq.s32.totalorder %s18, 1
      %p125 = por %p123, %p124
      %p127 = scmp.ne.s32.totalorder %s112, %s126
      %p128 = scmp.eq.s32.totalorder %s18, 0
      %p129 = por %p127, %p128
      %s130 = ssub.s32 %s12, %s19
      %p131 = scmp.eq.s32.totalorder %s130, 0
      %s133 = sadd.s32 %s132, 1
      %s134 = scalar_select %p131, %s132, %s133
      %p137 = pneg %p131
      %p138 = scmp.eq.s32.totalorder %s12, 1
      %p139 = por %p137, %p138
      %p140 = scmp.ne.s32.totalorder %s132, %s135
      %p141 = scmp.eq.s32.totalorder %s12, 0
      %p142 = por %p140, %p141
      %p143 = scmp.ne.s32.totalorder %s132, %s135
      %p144 = scmp.eq.s32.totalorder %s17, 1
      %p145 = por %p143, %p144
      %p146 = scmp.ne.s32.totalorder %s135, %s136
      %p147 = scmp.eq.s32.totalorder %s17, 0
      %p148 = por %p146, %p147
      %p149 = scmp.ne.s32.totalorder %s135, %s136
      %p150 = scmp.eq.s32.totalorder %s18, 1
      %p151 = por %p149, %p150
      %p153 = scmp.ne.s32.totalorder %s136, %s152
      %p154 = scmp.eq.s32.totalorder %s18, 0
      %p155 = por %p153, %p154
      %p156 = scmp.le.s32.totalorder 1, %s12
      %p157 = scmp.lt.s32.totalorder %s12, 3
      %p158 = pnand %p156, %p157
      %p159 = pneg %p158
      // Predicated region
      $region9: #{tpu_custom_call.1} parent=5 // pred_check
        _
      $region10: #{tpu_custom_call.1} parent=5 // pred_check_branch
        %161 = sbr.rel (%p158) target = $region12
      $region11: #{tpu_custom_call.1} parent=5 // pred_region
        %s162 = ssub.s32 %s12, 1
        // Predicated region
        $region13: #{tpu_custom_call.1} parent=11 // pred_check
          %p163 = pneg %p59
        $region14: #{tpu_custom_call.1} parent=11 // pred_check_branch
          %165 = sbr.rel (%p163) target = $region16
        $region15: #{tpu_custom_call.1} parent=11 // pred_region
          _
        $region16: #{tpu_custom_call.1} parent=11 // pred_fallthru
          _
        // Predicated region
        $region17: #{tpu_custom_call.1} parent=11 // pred_check
          %p166 = pneg %p80
        $region18: #{tpu_custom_call.1} parent=11 // pred_check_branch
          %168 = sbr.rel (%p166) target = $region20
        $region19: #{tpu_custom_call.1} parent=11 // pred_region
          _
        $region20: #{tpu_custom_call.1} parent=11 // pred_fallthru
          _
        // Predicated region
        $region21: #{tpu_custom_call.1} parent=11 // pred_check
          %p169 = pneg %p101
        $region22: #{tpu_custom_call.1} parent=11 // pred_check_branch
          %171 = sbr.rel (%p169) target = $region24
        $region23: #{tpu_custom_call.1} parent=11 // pred_region
          %173 = vsyncadd [#allocation3], 0
          %s174 = sshll.u32 %s3, 4
          %s175 = int_to_ptr.hbm [resolvable:$true] %s174
          %s176 = sshll.u32 [#allocation2], 4
          %s177 = int_to_ptr.vmem [resolvable:$true] %s176
          %182 = dma.hbm_to_vmem [thread:$0]  %s175, 2048, %s177, [#allocation3], 128, 128, 8
        $region24: #{tpu_custom_call.1} parent=11 // pred_fallthru
          _
        // Predicated region
        $region25: #{tpu_custom_call.1} parent=11 // pred_check
          %p183 = pneg %p122
        $region26: #{tpu_custom_call.1} parent=11 // pred_check_branch
          %185 = sbr.rel (%p183) target = $region28
        $region27: #{tpu_custom_call.1} parent=11 // pred_region
          _
        $region28: #{tpu_custom_call.1} parent=11 // pred_fallthru
          _
      $region12: #{tpu_custom_call.1} parent=5 // pred_fallthru
        _
      %p186 = scmp.lt.s32.totalorder %s12, 2
      // Predicated region
      $region29: #{tpu_custom_call.1} parent=5 // pred_check
        %p187 = pneg %p186
      $region30: #{tpu_custom_call.1} parent=5 // pred_check_branch
        %189 = sbr.rel (%p187) target = $region32
      $region31: #{tpu_custom_call.1} parent=5 // pred_region
        // Predicated region
        $region33: #{tpu_custom_call.1} parent=31 // pred_check
          %p190 = pneg %p32
        $region34: #{tpu_custom_call.1} parent=31 // pred_check_branch
          %192 = sbr.rel (%p190) target = $region36
        $region35: #{tpu_custom_call.1} parent=31 // pred_region
          %s193 = smul.u32 2, %s12
          %p194 = scmp.lt.s32.totalorder %s193, 3
          %s195 = scalar_select %p194, %s193, 3
          %s196 = smul.addr %s195, 8
          %s197 = scalar_lea.vmem %s0, %s196
          %s198 = smul.u32 2, %s12
        $region36: #{tpu_custom_call.1} parent=31 // pred_fallthru
          _
      $region32: #{tpu_custom_call.1} parent=5 // pred_fallthru
        _
      %p199 = scmp.le.s32.totalorder 1, %s12
      %p200 = scmp.lt.s32.totalorder %s12, 3
      %p201 = pnand %p199, %p200
      %p202 = pneg %p201
      // Predicated region
      $region37: #{tpu_custom_call.1} parent=5 // pred_check
        _
      $region38: #{tpu_custom_call.1} parent=5 // pred_check_branch
        %204 = sbr.rel (%p201) target = $region40
      $region39: #{tpu_custom_call.1} parent=5 // pred_region
        %s205 = ssub.s32 %s12, 1
        // Predicated region
        $region41: #{tpu_custom_call.1} parent=39 // pred_check
          %p206 = pneg %p101
        $region42: #{tpu_custom_call.1} parent=39 // pred_check_branch
          %208 = sbr.rel (%p206) target = $region44
        $region43: #{tpu_custom_call.1} parent=39 // pred_region
          %210 = dma.done [#allocation3], 2048
        $region44: #{tpu_custom_call.1} parent=39 // pred_fallthru
          _
        %s211 = smul.u32 2, %s17
        %p212 = scmp.lt.s32.totalorder %s211, 3
        %s213 = scalar_select %p212, %s211, 3
        %s214 = smul.addr %s213, 8
        %s215 = scalar_lea.vmem %s0, %s214
        %p216 = pneg %p38
        %p217 = pneg %p35
        %p218 = pneg %p59
        %p219 = pneg %p56
        %p220 = pneg %p80
        %p221 = pneg %p77
        %p222 = pneg %p101
        %p223 = pneg %p98
        %p224 = pneg %p122
        %p225 = pneg %p119
        %p226 = pneg %p148
        %p227 = pneg %p145
        %s228 = smul.u32 2, %s17
        %p229 = scmp.lt.s32.totalorder %s228, 3
        %s230 = scalar_select %p229, %s228, 3
        %s231 = smul.addr %s230, 8
        %s232 = scalar_lea.vmem %s5, %s231
        %s233 = smul.u32 2, %s17
        %p234 = scmp.lt.s32.totalorder %s233, 3
        %s235 = scalar_select %p234, %s233, 3
        %s236 = smul.addr %s235, 8
        %s237 = scalar_lea.vmem %s0, %s236
        %s238 = smul.u32 2, %s17
        %s239 = smul.u32 2, %s17
        %p240 = scmp.lt.s32.totalorder %s239, 3
        %s241 = scalar_select %p240, %s239, 3
        %s242 = smul.addr %s241, 8
        %s243 = scalar_lea.vmem %s5, %s242
        %s244 = smul.u32 2, %s17
        %v245 = vld [vmem:[%s237] sm:$0xff]
        %v246 = vld [vmem:[%s237 + $0x8] sm:$0xff]
        %v247 = vld [vmem:[%s1] sm:$0xff]
        %v248 = vld [vmem:[%s1 + $0x8] sm:$0xff]
        %v249 = vld [vmem:[%s2] sm:$0x1]
        %v251 = vperm.slane %v249, 0
        %vm253 = vcmask 130048
        %v255 = vsel %vm253, %v245, 0
        %v258 = vsel %vm253, %v246, 0
        %260 = vmatpush.msra.mxu0 0.0
        %261 = vmatpush.msra.mxu0 0.0
        %262 = vmatpush.msra.mxu0 0.0
        %263 = vmatpush.msra.mxu0 0.0
        %264 = vmatpush.msra.mxu0 0.0
        %265 = vmatpush.msra.mxu0 0.0
        %266 = vmatpush.msra.mxu0 0.0
        %267 = vmatpush.msra.mxu0 0.0
        %268 = vmatpush.msra.mxu0 0.0
        %269 = vmatpush.msra.mxu0 0.0
        %270 = vmatpush.msra.mxu0 0.0
        %271 = vmatpush.msra.mxu0 0.0
        %272 = vmatpush.msra.mxu0 0.0
        %273 = vmatpush.msra.mxu0 0.0
        %274 = vmatpush.msra.mxu0 %v248
        %275 = vmatpush.msra.mxu0 %v247
        %276 = vmatmul.f32.gmra.mxu0 %v255
        %v277 = vpop.f32.mrf.mxu0
        %v278 = vadd.f32 %v251, %v277
        %279 = vmatmul.f32.gmra.mxu0 %v258
        %v280 = vpop.f32.mrf.mxu0
        %v281 = vadd.f32 %v251, %v280
        %282 = vdwg.mxu0
        %v283 = vmax.f32 %v278, 0.0
        %v284 = vmax.f32 %v281, 0.0
        %v285 = vld [vmem:[#allocation2] sm:$0xff]
        %v286 = vld [vmem:[#allocation2 + $0x8] sm:$0xff]
        %v287 = vld [vmem:[#allocation2 + $0x10] sm:$0xff]
        %v288 = vld [vmem:[#allocation2 + $0x18] sm:$0xff]
        %v289 = vld [vmem:[#allocation2 + $0x20] sm:$0xff]
        %v290 = vld [vmem:[#allocation2 + $0x28] sm:$0xff]
        %v291 = vld [vmem:[#allocation2 + $0x30] sm:$0xff]
        %v292 = vld [vmem:[#allocation2 + $0x38] sm:$0xff]
        %v293 = vld [vmem:[#allocation2 + $0x40] sm:$0xff]
        %v294 = vld [vmem:[#allocation2 + $0x48] sm:$0xff]
        %v295 = vld [vmem:[#allocation2 + $0x50] sm:$0xff]
        %v296 = vld [vmem:[#allocation2 + $0x58] sm:$0xff]
        %v297 = vld [vmem:[#allocation2 + $0x60] sm:$0xff]
        %v298 = vld [vmem:[#allocation2 + $0x68] sm:$0xff]
        %v299 = vld [vmem:[#allocation2 + $0x70] sm:$0xff]
        %v300 = vld [vmem:[#allocation2 + $0x78] sm:$0xff]
        %v301 = vld [vmem:[%s4] sm:$0x1]
        %v303 = vperm.slane %v301, 0
        %305 = vmatpush.msra.mxu0 %v300
        %306 = vmatpush.msra.mxu0 %v299
        %307 = vmatpush.msra.mxu0 %v298
        %308 = vmatpush.msra.mxu0 %v297
        %309 = vmatpush.msra.mxu0 %v296
        %310 = vmatpush.msra.mxu0 %v295
        %311 = vmatpush.msra.mxu0 %v294
        %312 = vmatpush.msra.mxu0 %v293
        %313 = vmatpush.msra.mxu0 %v292
        %314 = vmatpush.msra.mxu0 %v291
        %315 = vmatpush.msra.mxu0 %v290
        %316 = vmatpush.msra.mxu0 %v289
        %317 = vmatpush.msra.mxu0 %v288
        %318 = vmatpush.msra.mxu0 %v287
        %319 = vmatpush.msra.mxu0 %v286
        %320 = vmatpush.msra.mxu0 %v285
        %321 = vmatmul.f32.gmra.mxu0 %v283
        %v322 = vpop.f32.mrf.mxu0
        %v323 = vadd.f32 %v303, %v322
        %324 = vmatmul.f32.gmra.mxu0 %v284
        %v325 = vpop.f32.mrf.mxu0
        %v326 = vadd.f32 %v303, %v325
        %327 = vdwg.mxu0
        %vm328 = vcmask 31744
        %329 = vst.msk [vmem:[%s243] sm:$0xff] %vm328, %v323
        %330 = vst.msk [vmem:[%s243 + $0x8] sm:$0xff] %vm328, %v326
        %s331 = smul.u32 2, %s17
        %p332 = scmp.lt.s32.totalorder %s331, 3
        %s333 = scalar_select %p332, %s331, 3
        %s334 = smul.addr %s333, 8
        %s335 = scalar_lea.vmem %s5, %s334
        // Predicated region
        $region45: #{tpu_custom_call.1} parent=39 // pred_check
          %p336 = pneg %p145
        $region46: #{tpu_custom_call.1} parent=39 // pred_check_branch
          %338 = sbr.rel (%p336) target = $region48
        $region47: #{tpu_custom_call.1} parent=39 // pred_region
          %s339 = smul.u32 2, %s17
        $region48: #{tpu_custom_call.1} parent=39 // pred_fallthru
          _
      $region40: #{tpu_custom_call.1} parent=5 // pred_fallthru
        _
      %p340 = scmp.le.s32.totalorder 2, %s12
      // Predicated region
      $region49: #{tpu_custom_call.1} parent=5 // pred_check
        %p341 = pneg %p340
      $region50: #{tpu_custom_call.1} parent=5 // pred_check_branch
        %343 = sbr.rel (%p341) target = $region52
      $region51: #{tpu_custom_call.1} parent=5 // pred_region
        %s344 = ssub.s32 %s12, 2
        // Predicated region
        $region53: #{tpu_custom_call.1} parent=51 // pred_check
          %p345 = pneg %p151
        $region54: #{tpu_custom_call.1} parent=51 // pred_check_branch
          %347 = sbr.rel (%p345) target = $region56
        $region55: #{tpu_custom_call.1} parent=51 // pred_region
          %s348 = smul.u32 2, %s18
          %p349 = scmp.lt.s32.totalorder %s348, 3
          %s350 = scalar_select %p349, %s348, 3
          %s351 = smul.addr %s350, 8
          %s352 = scalar_lea.vmem %s5, %s351
        $region56: #{tpu_custom_call.1} parent=51 // pred_fallthru
          _
      $region52: #{tpu_custom_call.1} parent=5 // pred_fallthru
        _
    $region6: #{tpu_custom_call.1} parent=1 // loop_footer
      %s16 = sadd.s32 1, %s12
    $region7: #{tpu_custom_call.1} parent=1 // loop_footer_branch
      %11 = sbr.rel target = $region3
    $region8: #{tpu_custom_call.1} parent=1 // loop_exit
      _
    %353 = vsyncpa [#allocation3], 1
    %s354 = scalar_lea.sflag [#allocation3], 1
    %355 = vsyncpa %s354, 1

</llo_original>
